<compile_context>
chip_gen: v6e
topology: v6e:2x2x1
jax: 0.10.0
libtpu: 0.0.40
codegen_flags: <defaults>
</compile_context>

<pallas_src>
import functools

import jax
import jax.numpy as jnp
from jax.experimental import pallas as pl
from jax.experimental.pallas import tpu as pltpu


def _round_up(x, m):
    return (x + m - 1) // m * m


def _log_softmax(x):
    m = jnp.max(x, axis=-1, keepdims=True)
    s = x - m
    return s - jnp.log(jnp.sum(jnp.exp(s), axis=-1, keepdims=True))


def _distill_loss_kernel(x_ref, wt_ref, bt_ref, out_ref, kd_ref, lab_ref,
                         base_ref, kl_ref, acc_ref, *, tau, num_classes, batch):
    """Grid = (batch_tiles, d_chunks); the D axis (axis 1) is the reduction."""
    # Keep all grid-introspection calls at the kernel top level (outside the
    # pl.when closures) so they lower correctly in both hardware and interpret
    # modes.
    i = pl.program_id(0)
    k = pl.program_id(1)
    nk = pl.num_programs(1)

    # ---- teacher forward: seed acc with the bias, then stream x/W tiles -----
    @pl.when(k == 0)
    def _():
        acc_ref[...] = jnp.broadcast_to(bt_ref[...].astype(jnp.float32),
                                        acc_ref.shape)

    acc_ref[...] += jnp.dot(x_ref[...].astype(jnp.bfloat16),
                            wt_ref[...].astype(jnp.bfloat16),
                            preferred_element_type=jnp.float32)

    # ---- finalize once per batch tile: /T, log-softmaxes, CE + KL sums ------
    @pl.when(k == nk - 1)
    def _():
        tb, kp = acc_ref.shape
        f32 = jnp.float32
        inv_t = f32(1.0 / tau)

        class_ids = jax.lax.broadcasted_iota(jnp.int32, (tb, kp), 1)
        row_ids = jax.lax.broadcasted_iota(jnp.int32, (tb, 1), 0) + i * tb
        row_mask = row_ids < batch                                  # [tb, 1]

        t_logits = acc_ref[...] * inv_t            # bias already in acc
        s_out = out_ref[...].astype(f32)
        s_kd = kd_ref[...].astype(f32) * inv_t

        if num_classes == kp:
            # No class padding: skip the masking work entirely (trace-time).
            valid = row_mask
        else:
            neg = f32(-1e30)   # finite sentinel keeps exp / 0*x NaN-free
            class_mask = class_ids < num_classes
            valid = class_mask & row_mask
            t_logits = jnp.where(class_mask, t_logits, neg)
            s_out = jnp.where(class_mask, s_out, neg)
            s_kd = jnp.where(class_mask, s_kd, neg)

        log_t = _log_softmax(t_logits)
        log_p = _log_softmax(s_out)
        log_s = _log_softmax(s_kd)

        # base criterion: sum over tile of -log_softmax(outputs)[row, label].
        # Padded rows carry label == -1 and are additionally row-masked.
        ce_mask = (class_ids == lab_ref[...]) & valid
        base_partial = jnp.sum(jnp.where(ce_mask, -log_p, 0.0))

        # soft distillation: sum of exp(log_t) * (log_t - log_s).
        kl_terms = jnp.exp(log_t) * (log_t - log_s)
        kl_partial = jnp.sum(jnp.where(valid, kl_terms, 0.0))

        base_ref[...] = jnp.full(base_ref.shape, base_partial, f32)
        kl_ref[...] = jnp.full(kl_ref.shape, kl_partial, f32)


def distillation_loss_multicrop(inputs, outputs, outputs_kd, labels,
                                teacher_w, teacher_b, *, alpha=0.5, tau=3.0,
                                batch_tile=512, d_tile=1024):
    """Returns (loss, base_loss*(1-alpha), distillation_loss*alpha) as scalars.

    `inputs` may be a single NCHW tensor or a list of two crops (global/local),
    mirroring the multi-crop path of the PyTorch module: the teacher inputs of
    both crops are concatenated along the batch axis.
    """
    if isinstance(inputs, (list, tuple)):
        inputs = jnp.concatenate(list(inputs), axis=0)
    # TODO(synk): the multi-crop variant where the teacher batch (2*B) differs
    #             from the student batch is not supported; batches must match.
    B, K = outputs.shape
    x_flat = inputs.reshape(inputs.shape[0], -1)
    assert x_flat.shape[0] == B, "teacher/student batch mismatch"
    D = x_flat.shape[1]

    # Lane-dense / sublane-aligned padded shapes and tile sizes.  batch_tile is
    # large so W is re-streamed as few times as possible; on v7x prefer
    # batch_tile = ceil(B/2) so nb == 2 keeps both TensorCores busy.
    k_pad = _round_up(K, 128)
    tb = min(_round_up(B, 8), batch_tile)
    b_pad = _round_up(B, tb)
    td = min(_round_up(D, 128), d_tile)
    d_pad = _round_up(D, td)
    nb, nk = b_pad // tb, d_pad // td

    # x stays in its native dtype (the in-kernel cast to bf16 avoids a second
    # HBM materialization of the largest tensor); padding is a no-op when the
    # shapes are already aligned.
    x_p = jnp.pad(x_flat, ((0, b_pad - B), (0, d_pad - D)))
    # W is pre-cast to bf16 only when it is re-streamed across batch tiles.
    w_in = teacher_w.astype(jnp.bfloat16) if nb >= 2 else teacher_w
    w_p = jnp.pad(w_in, ((0, d_pad - D), (0, k_pad - K)))
    b_p = jnp.pad(teacher_b.reshape(1, -1).astype(jnp.float32),
                  ((0, 0), (0, k_pad - K)))
    out_p = jnp.pad(outputs, ((0, b_pad - B), (0, k_pad - K)))
    kd_p = jnp.pad(outputs_kd, ((0, b_pad - B), (0, k_pad - K)))
    lab_p = jnp.pad(labels.astype(jnp.int32), (0, b_pad - B),
                    constant_values=-1).reshape(b_pad, 1)

    kernel = functools.partial(_distill_loss_kernel, tau=float(tau),
                               num_classes=K, batch=B)

    base_parts, kl_parts = pl.pallas_call(
        kernel,
        out_shape=(jax.ShapeDtypeStruct((nb, 8, 128), jnp.float32),
                   jax.ShapeDtypeStruct((nb, 8, 128), jnp.float32)),
        grid_spec=pltpu.PrefetchScalarGridSpec(
            num_scalar_prefetch=0,
            grid=(nb, nk),
            in_specs=[
                pl.BlockSpec((tb, td), lambda i, k: (i, k)),       # x (native)
                pl.BlockSpec((td, k_pad), lambda i, k: (k, 0)),    # teacher W
                pl.BlockSpec((1, k_pad), lambda i, k: (0, 0)),     # teacher b
                pl.BlockSpec((tb, k_pad), lambda i, k: (i, 0)),    # class token
                pl.BlockSpec((tb, k_pad), lambda i, k: (i, 0)),    # dist token
                pl.BlockSpec((tb, 1), lambda i, k: (i, 0)),        # int32 labels
            ],
            out_specs=[
                pl.BlockSpec((1, 8, 128), lambda i, k: (i, 0, 0)),
                pl.BlockSpec((1, 8, 128), lambda i, k: (i, 0, 0)),
            ],
            scratch_shapes=[pltpu.VMEM((tb, k_pad), jnp.float32)],
        ),
        compiler_params=pltpu.CompilerParams(
            dimension_semantics=("parallel", "arbitrary"),
            vmem_limit_bytes=48 * 1024 * 1024),
    )(x_p, w_p, b_p, out_p, kd_p, lab_p)

    # Tiny follow-up reduction over per-batch-tile partials; the scale factors
    # are static Python floats (1/B, T*T/numel, alpha).
    base_sum = jnp.sum(base_parts[:, 0, 0])
    kl_sum = jnp.sum(kl_parts[:, 0, 0])
    base_loss = base_sum / float(B)
    distillation_loss = kl_sum * (float(tau) * float(tau)) / float(B * K)
    loss = base_loss * (1.0 - alpha) + distillation_loss * alpha
    return loss, base_loss * (1.0 - alpha), distillation_loss * alpha


def _reference(inputs, outputs, outputs_kd, labels, teacher_w, teacher_b,
               alpha, tau, num_classes):
    """Pure-JAX reference of the same forward pass (teacher matmul also uses
    bf16 operands with f32 accumulation, matching the kernel's MXU dtype)."""
    if isinstance(inputs, (list, tuple)):
        inputs = jnp.concatenate(list(inputs), axis=0)
    b_in = inputs.shape[0]
    x_flat = inputs.reshape(b_in, -1)
    teacher_logits = jnp.dot(x_flat.astype(jnp.bfloat16),
                             teacher_w.astype(jnp.bfloat16),
                             preferred_element_type=jnp.float32)
    teacher_logits = teacher_logits + teacher_b.reshape(1, -1)
    onehot = jax.nn.one_hot(labels, num_classes, dtype=jnp.float32)

    base_loss = -jnp.mean(jnp.sum(onehot * jax.nn.log_softmax(outputs, -1), -1))
    T = tau
    log_s = jax.nn.log_softmax(outputs_kd / T, -1)
    log_t = jax.nn.log_softmax(teacher_logits / T, -1)
    kl = jnp.sum(jnp.exp(log_t) * (log_t - log_s))
    distill = kl * (T * T) / outputs_kd.size
    loss = base_loss * (1 - alpha) + distill * alpha
    return loss, base_loss * (1 - alpha), distill * alpha


if __name__ == "__main__":
    alpha, tau = 0.5, 3.0

    # --- Case 1: small NCHW input, 16 classes (aligned D) ---------------------
    key = jax.random.PRNGKey(0)
    B, C, H, W = 2, 4, 16, 16
    num_classes = 16
    D = C * H * W
    k1, k2, k3, k4, k5 = jax.random.split(key, 5)
    inputs = jax.random.normal(k1, (B, C, H, W), jnp.float32)
    outputs = jax.random.normal(k2, (B, num_classes), jnp.float32)      # class token
    outputs_kd = jax.random.normal(k3, (B, num_classes), jnp.float32)   # dist token
    labels = jax.random.randint(k4, (B,), 0, num_classes)
    teacher_w = jax.random.normal(k5, (D, num_classes), jnp.float32) * 0.02
    teacher_b = jax.random.normal(jax.random.PRNGKey(1),
                                  (num_classes,), jnp.float32) * 0.1

    got = distillation_loss_multicrop(inputs, outputs, outputs_kd, labels,
                                      teacher_w, teacher_b, alpha=alpha, tau=tau)
    jax.block_until_ready(got)
    ref = _reference(inputs, outputs, outputs_kd, labels, teacher_w, teacher_b,
                     alpha, tau, num_classes)
    for g, r in zip(got, ref):
        assert jnp.allclose(g, r, atol=2e-4, rtol=2e-4), (g, r)

    # --- Case 2: un-aligned batch / classes / D (exercises padding + masks) ---
    B2, C2, H2, W2 = 12, 3, 8, 8
    num_classes2 = 37
    D2 = C2 * H2 * W2
    j1, j2, j3, j4, j5 = jax.random.split(jax.random.PRNGKey(7), 5)
    inputs2 = jax.random.normal(j1, (B2, C2, H2, W2), jnp.float32)
    outputs2 = jax.random.normal(j2, (B2, num_classes2), jnp.float32)
    outputs_kd2 = jax.random.normal(j3, (B2, num_classes2), jnp.float32)
    labels2 = jax.random.randint(j4, (B2,), 0, num_classes2)
    teacher_w2 = jax.random.normal(j5, (D2, num_classes2), jnp.float32) * 0.05
    teacher_b2 = jnp.zeros((num_classes2,), jnp.float32)

    got2 = distillation_loss_multicrop(inputs2, outputs2, outputs_kd2, labels2,
                                       teacher_w2, teacher_b2,
                                       alpha=alpha, tau=tau)
    jax.block_until_ready(got2)
    ref2 = _reference(inputs2, outputs2, outputs_kd2, labels2, teacher_w2,
                      teacher_b2, alpha, tau, num_classes2)
    for g, r in zip(got2, ref2):
        assert jnp.allclose(g, r, atol=2e-4, rtol=2e-4), (g, r)

    print("KERNEL_OK")
</pallas_src>

<mosaic_0001>
module attributes {stable_mosaic.version = 11 : i64} {
  func.func @_distill_loss_kernel(%arg0: i32, %arg1: i32, %arg2: memref<8x1024xf32, #tpu.memory_space<vmem>>, %arg3: memref<1024x128xf32, #tpu.memory_space<vmem>>, %arg4: memref<1x128xf32, #tpu.memory_space<vmem>>, %arg5: memref<8x128xf32, #tpu.memory_space<vmem>>, %arg6: memref<8x128xf32, #tpu.memory_space<vmem>>, %arg7: memref<8x1xi32, #tpu.memory_space<vmem>>, %arg8: memref<1x8x128xf32, #tpu.memory_space<vmem>>, %arg9: memref<1x8x128xf32, #tpu.memory_space<vmem>>, %arg10: memref<8x128xf32, #tpu.memory_space<vmem>>) attributes {dimension_semantics = [#tpu.dimension_semantics<parallel>, #tpu.dimension_semantics<arbitrary>], iteration_bounds = array<i64: 1, 1>, scalar_prefetch = 0 : i64, scratch_operands = 1 : i64, tpu.core_type = #tpu.core_type<tc>, window_params = [{transform_indices = @transform_0, window_bounds = array<i64: 8, 1024>}, {transform_indices = @transform_1, window_bounds = array<i64: 1024, 128>}, {pipeline_mode = #tpu.pipeline_mode<synchronous>, transform_indices = @transform_2, window_bounds = array<i64: 1, 128>}, {transform_indices = @transform_3, window_bounds = array<i64: 8, 128>}, {transform_indices = @transform_4, window_bounds = array<i64: 8, 128>}, {transform_indices = @transform_5, window_bounds = array<i64: 8, 1>}, {transform_indices = @transform_6, window_bounds = array<i64: 1, 8, 128>}, {transform_indices = @transform_7, window_bounds = array<i64: 1, 8, 128>}]} {
    %c0_i32 = arith.constant 0 : i32
    %0 = arith.cmpi eq, %arg1, %c0_i32 : i32
    %1 = arith.extui %0 : i1 to i32
    %c0_i32_0 = arith.constant 0 : i32
    %2 = arith.cmpi ne, %1, %c0_i32_0 : i32
    scf.if %2 {
      %c0_10 = arith.constant 0 : index
      %c0_11 = arith.constant 0 : index
      %14 = vector.load %arg4[%c0_10, %c0_11] : memref<1x128xf32, #tpu.memory_space<vmem>>, vector<1x128xf32>
      %15 = vector.shape_cast %14 : vector<1x128xf32> to vector<1x128xf32>
      %16 = vector.broadcast %15 : vector<1x128xf32> to vector<8x128xf32>
      %c0_12 = arith.constant 0 : index
      %c0_13 = arith.constant 0 : index
      %17 = vector.load %arg10[%c0_12, %c0_13] : memref<8x128xf32, #tpu.memory_space<vmem>>, vector<8x128xf32>
      tpu.vector_store %arg10[%c0_12, %c0_13], %16 {strides = array<i32>} : memref<8x128xf32, #tpu.memory_space<vmem>>, vector<8x128xf32>,
    } else {
    }
    %c0 = arith.constant 0 : index
    %c0_1 = arith.constant 0 : index
    %3 = vector.load %arg10[%c0, %c0_1] : memref<8x128xf32, #tpu.memory_space<vmem>>, vector<8x128xf32>
    %c0_2 = arith.constant 0 : index
    %c0_3 = arith.constant 0 : index
    %4 = vector.load %arg2[%c0_2, %c0_3] : memref<8x1024xf32, #tpu.memory_space<vmem>>, vector<8x1024xf32>
    %5 = arith.truncf %4 : vector<8x1024xf32> to vector<8x1024xbf16>
    %c0_4 = arith.constant 0 : index
    %c0_5 = arith.constant 0 : index
    %6 = vector.load %arg3[%c0_4, %c0_5] : memref<1024x128xf32, #tpu.memory_space<vmem>>, vector<1024x128xf32>
    %7 = arith.truncf %6 : vector<1024x128xf32> to vector<1024x128xbf16>
    %cst = arith.constant dense<0.000000e+00> : vector<8x128xf32>
    %8 = tpu.matmul %5, %7, %cst {dimension_numbers = #tpu.dot_dimension_numbers<[1], [0], [0], [1], [0, 0, 1, 1], [], []>} : vector<8x1024xbf16>, vector<1024x128xbf16>, vector<8x128xf32> -> vector<8x128xf32>
    %9 = arith.addf %3, %8 : vector<8x128xf32>
    %c0_6 = arith.constant 0 : index
    %c0_7 = arith.constant 0 : index
    %10 = vector.load %arg10[%c0_6, %c0_7] : memref<8x128xf32, #tpu.memory_space<vmem>>, vector<8x128xf32>
    tpu.vector_store %arg10[%c0_6, %c0_7], %9 {strides = array<i32>} : memref<8x128xf32, #tpu.memory_space<vmem>>, vector<8x128xf32>,
    %c0_i32_8 = arith.constant 0 : i32
    %11 = arith.cmpi eq, %arg1, %c0_i32_8 : i32
    %12 = arith.extui %11 : i1 to i32
    %c0_i32_9 = arith.constant 0 : i32
    %13 = arith.cmpi ne, %12, %c0_i32_9 : i32
    scf.if %13 {
      %14 = tpu.iota {dimensions = array<i32: 1>} : vector<8x128xi32>
      %15 = tpu.iota {dimensions = array<i32: 0>} : vector<8x1xi32>
      %c8_i32 = arith.constant 8 : i32
      %16 = arith.muli %arg0, %c8_i32 : i32
      %17 = vector.broadcast %16 : i32 to vector<8x1xi32>
      %18 = arith.addi %15, %17 : vector<8x1xi32>
      %c2_i32 = arith.constant 2 : i32
      %19 = vector.broadcast %c2_i32 : i32 to vector<8x1xi32>
      %20 = arith.cmpi slt, %18, %19 : vector<8x1xi32>
      %c0_10 = arith.constant 0 : index
      %c0_11 = arith.constant 0 : index
      %21 = vector.load %arg10[%c0_10, %c0_11] : memref<8x128xf32, #tpu.memory_space<vmem>>, vector<8x128xf32>
      %cst_12 = arith.constant 0.333333343 : f32
      %22 = vector.broadcast %cst_12 : f32 to vector<8x128xf32>
      %23 = arith.mulf %21, %22 : vector<8x128xf32>
      %c0_13 = arith.constant 0 : index
      %c0_14 = arith.constant 0 : index
      %24 = vector.load %arg5[%c0_13, %c0_14] : memref<8x128xf32, #tpu.memory_space<vmem>>, vector<8x128xf32>
      %c0_15 = arith.constant 0 : index
      %c0_16 = arith.constant 0 : index
      %25 = vector.load %arg6[%c0_15, %c0_16] : memref<8x128xf32, #tpu.memory_space<vmem>>, vector<8x128xf32>
      %cst_17 = arith.constant 0.333333343 : f32
      %26 = vector.broadcast %cst_17 : f32 to vector<8x128xf32>
      %27 = arith.mulf %25, %26 : vector<8x128xf32>
      %c16_i32 = arith.constant 16 : i32
      %28 = vector.broadcast %c16_i32 : i32 to vector<8x128xi32>
      %29 = arith.cmpi slt, %14, %28 : vector<8x128xi32>
      %30 = vector.broadcast %20 : vector<8x1xi1> to vector<8x128xi1>
      %31 = arith.andi %29, %30 : vector<8x128xi1>
      %cst_18 = arith.constant -1.000000e+30 : f32
      %32 = vector.broadcast %cst_18 : f32 to vector<8x128xf32>
      %33 = arith.select %29, %23, %32 : vector<8x128xi1>, vector<8x128xf32>
      %cst_19 = arith.constant -1.000000e+30 : f32
      %34 = vector.broadcast %cst_19 : f32 to vector<8x128xf32>
      %35 = arith.select %29, %24, %34 : vector<8x128xi1>, vector<8x128xf32>
      %cst_20 = arith.constant -1.000000e+30 : f32
      %36 = vector.broadcast %cst_20 : f32 to vector<8x128xf32>
      %37 = arith.select %29, %27, %36 : vector<8x128xi1>, vector<8x128xf32>
      %cst_21 = arith.constant dense<0xFF800000> : vector<8xf32>
      %38 = vector.multi_reduction <maximumf>, %33, %cst_21 [1] : vector<8x128xf32> to vector<8xf32>
      %39 = vector.shape_cast %38 : vector<8xf32> to vector<8x1xf32>
      %40 = vector.broadcast %39 : vector<8x1xf32> to vector<8x128xf32>
      %41 = arith.subf %33, %40 : vector<8x128xf32>
      %42 = math.exp %41 : vector<8x128xf32>
      %cst_22 = arith.constant dense<0.000000e+00> : vector<8xf32>
      %43 = vector.multi_reduction <add>, %42, %cst_22 [1] : vector<8x128xf32> to vector<8xf32>
      %44 = vector.shape_cast %43 : vector<8xf32> to vector<8x1xf32>
      %45 = math.log %44 : vector<8x1xf32>
      %46 = vector.broadcast %45 : vector<8x1xf32> to vector<8x128xf32>
      %47 = arith.subf %41, %46 : vector<8x128xf32>
      %cst_23 = arith.constant dense<0xFF800000> : vector<8xf32>
      %48 = vector.multi_reduction <maximumf>, %35, %cst_23 [1] : vector<8x128xf32> to vector<8xf32>
      %49 = vector.shape_cast %48 : vector<8xf32> to vector<8x1xf32>
      %50 = vector.broadcast %49 : vector<8x1xf32> to vector<8x128xf32>
      %51 = arith.subf %35, %50 : vector<8x128xf32>
      %52 = math.exp %51 : vector<8x128xf32>
      %cst_24 = arith.constant dense<0.000000e+00> : vector<8xf32>
      %53 = vector.multi_reduction <add>, %52, %cst_24 [1] : vector<8x128xf32> to vector<8xf32>
      %54 = vector.shape_cast %53 : vector<8xf32> to vector<8x1xf32>
      %55 = math.log %54 : vector<8x1xf32>
      %56 = vector.broadcast %55 : vector<8x1xf32> to vector<8x128xf32>
      %57 = arith.subf %51, %56 : vector<8x128xf32>
      %cst_25 = arith.constant dense<0xFF800000> : vector<8xf32>
      %58 = vector.multi_reduction <maximumf>, %37, %cst_25 [1] : vector<8x128xf32> to vector<8xf32>
      %59 = vector.shape_cast %58 : vector<8xf32> to vector<8x1xf32>
      %60 = vector.broadcast %59 : vector<8x1xf32> to vector<8x128xf32>
      %61 = arith.subf %37, %60 : vector<8x128xf32>
      %62 = math.exp %61 : vector<8x128xf32>
      %cst_26 = arith.constant dense<0.000000e+00> : vector<8xf32>
      %63 = vector.multi_reduction <add>, %62, %cst_26 [1] : vector<8x128xf32> to vector<8xf32>
      %64 = vector.shape_cast %63 : vector<8xf32> to vector<8x1xf32>
      %65 = math.log %64 : vector<8x1xf32>
      %66 = vector.broadcast %65 : vector<8x1xf32> to vector<8x128xf32>
      %67 = arith.subf %61, %66 : vector<8x128xf32>
      %c0_27 = arith.constant 0 : index
      %c0_28 = arith.constant 0 : index
      %68 = vector.load %arg7[%c0_27, %c0_28] : memref<8x1xi32, #tpu.memory_space<vmem>>, vector<8x1xi32>
      %69 = vector.broadcast %68 : vector<8x1xi32> to vector<8x128xi32>
      %70 = arith.cmpi eq, %14, %69 : vector<8x128xi32>
      %71 = arith.andi %70, %31 : vector<8x128xi1>
      %cst_29 = arith.constant 0.000000e+00 : f32
      %72 = vector.broadcast %cst_29 : f32 to vector<8x128xf32>
      %73 = arith.subf %72, %57 : vector<8x128xf32>
      %cst_30 = arith.constant 0.000000e+00 : f32
      %74 = vector.broadcast %cst_30 : f32 to vector<8x128xf32>
      %75 = arith.select %71, %73, %74 : vector<8x128xi1>, vector<8x128xf32>
      %76 = vector.shape_cast %75 : vector<8x128xf32> to vector<1x8x128xf32>
      %cst_31 = arith.constant dense<0.000000e+00> : vector<1xf32>
      %77 = vector.multi_reduction <add>, %76, %cst_31 [1, 2] : vector<1x8x128xf32> to vector<1xf32>
      %78 = vector.shape_cast %77 : vector<1xf32> to vector<1x1x1xf32>
      %79 = vector.extract %78[0, 0, 0] : f32 from vector<1x1x1xf32>
      %80 = math.exp %47 : vector<8x128xf32>
      %81 = arith.subf %47, %67 : vector<8x128xf32>
      %82 = arith.mulf %80, %81 : vector<8x128xf32>
      %cst_32 = arith.constant 0.000000e+00 : f32
      %83 = vector.broadcast %cst_32 : f32 to vector<8x128xf32>
      %84 = arith.select %31, %82, %83 : vector<8x128xi1>, vector<8x128xf32>
      %85 = vector.shape_cast %84 : vector<8x128xf32> to vector<1x8x128xf32>
      %cst_33 = arith.constant dense<0.000000e+00> : vector<1xf32>
      %86 = vector.multi_reduction <add>, %85, %cst_33 [1, 2] : vector<1x8x128xf32> to vector<1xf32>
      %87 = vector.shape_cast %86 : vector<1xf32> to vector<1x1x1xf32>
      %88 = vector.extract %87[0, 0, 0] : f32 from vector<1x1x1xf32>
      %89 = vector.broadcast %79 : f32 to vector<1x8x128xf32>
      %c0_34 = arith.constant 0 : index
      %c0_35 = arith.constant 0 : index
      %c0_36 = arith.constant 0 : index
      %90 = vector.load %arg8[%c0_34, %c0_35, %c0_36] : memref<1x8x128xf32, #tpu.memory_space<vmem>>, vector<1x8x128xf32>
      tpu.vector_store %arg8[%c0_34, %c0_35, %c0_36], %89 {strides = array<i32>} : memref<1x8x128xf32, #tpu.memory_space<vmem>>, vector<1x8x128xf32>,
      %91 = vector.broadcast %88 : f32 to vector<1x8x128xf32>
      %c0_37 = arith.constant 0 : index
      %c0_38 = arith.constant 0 : index
      %c0_39 = arith.constant 0 : index
      %92 = vector.load %arg9[%c0_37, %c0_38, %c0_39] : memref<1x8x128xf32, #tpu.memory_space<vmem>>, vector<1x8x128xf32>
      tpu.vector_store %arg9[%c0_37, %c0_38, %c0_39], %91 {strides = array<i32>} : memref<1x8x128xf32, #tpu.memory_space<vmem>>, vector<1x8x128xf32>,
    } else {
    }
    return
  }
  func.func @transform_0(%arg0: i32, %arg1: i32) -> (i32, i32) {
    %c0_i32 = arith.constant 0 : i32
    return %arg0, %arg1 : i32, i32
  }
  func.func @transform_1(%arg0: i32, %arg1: i32) -> (i32, i32) {
    %c0_i32 = arith.constant 0 : i32
    %c0_i32_0 = arith.constant 0 : i32
    return %arg1, %c0_i32 : i32, i32
  }
  func.func @transform_2(%arg0: i32, %arg1: i32) -> (i32, i32) {
    %c0_i32 = arith.constant 0 : i32
    %c0_i32_0 = arith.constant 0 : i32
    %c0_i32_1 = arith.constant 0 : i32
    return %c0_i32, %c0_i32_0 : i32, i32
  }
  func.func @transform_3(%arg0: i32, %arg1: i32) -> (i32, i32) {
    %c0_i32 = arith.constant 0 : i32
    %c0_i32_0 = arith.constant 0 : i32
    return %arg0, %c0_i32 : i32, i32
  }
  func.func @transform_4(%arg0: i32, %arg1: i32) -> (i32, i32) {
    %c0_i32 = arith.constant 0 : i32
    %c0_i32_0 = arith.constant 0 : i32
    return %arg0, %c0_i32 : i32, i32
  }
  func.func @transform_5(%arg0: i32, %arg1: i32) -> (i32, i32) {
    %c0_i32 = arith.constant 0 : i32
    %c0_i32_0 = arith.constant 0 : i32
    return %arg0, %c0_i32 : i32, i32
  }
  func.func @transform_6(%arg0: i32, %arg1: i32) -> (i32, i32, i32) {
    %c0_i32 = arith.constant 0 : i32
    %c0_i32_0 = arith.constant 0 : i32
    %c0_i32_1 = arith.constant 0 : i32
    return %arg0, %c0_i32, %c0_i32_0 : i32, i32, i32
  }
  func.func @transform_7(%arg0: i32, %arg1: i32) -> (i32, i32, i32) {
    %c0_i32 = arith.constant 0 : i32
    %c0_i32_0 = arith.constant 0 : i32
    %c0_i32_1 = arith.constant 0 : i32
    return %arg0, %c0_i32, %c0_i32_0 : i32, i32, i32
  }
}

</mosaic_0001>

<llo_original>
// kernel: tpu_custom_call.1
$region0: #{tpu_custom_call.1}
  #allocation0 [shape = 'u32[]', space=smem, size = 0x4, offset = 0x4, fixed_abs, tag = 'smem constant byte address 0x4 - core index']
  #allocation1 [shape = 'u32[144,128]{1,0:T(1,128)}', space=vmem, size = 0x12000, scoped, tag = 'internal scratch']
  #allocation2 [shape = 'f32[8,128]{1,0:T(8,128)}', space=vmem, size = 0x1000, scoped, tag = 'scratch operand']
  %s0 = inlined_call_operand.hbm [shape: f32[8,1024], index: 0, kind: input, shape index: {}]
  %s1 = inlined_call_operand.hbm [shape: f32[1024,128], index: 1, kind: input, shape index: {}]
  %s2 = inlined_call_operand.hbm [shape: f32[1,128], index: 2, kind: input, shape index: {}]
  %s3 = inlined_call_operand.vmem [shape: f32[8,128], index: 3, kind: input, shape index: {}]
  %s4 = inlined_call_operand.vmem [shape: f32[8,128], index: 4, kind: input, shape index: {}]
  %s5 = inlined_call_operand.vmem [shape: s32[8,1], index: 5, kind: input, shape index: {}]
  %s6 = inlined_call_operand.hbm [shape: f32[1,8,128], index: 6, kind: output, shape index: {0}]
  %s7 = inlined_call_operand.hbm [shape: f32[1,8,128], index: 7, kind: output, shape index: {1}]
  %8 = xla_tuple %s6, %s7
  %s9 = sld [smem:[#allocation0]]
  $region62: #{tpu_custom_call.1} parent=0
    _
  %s11 = ssub.s32 1, %s9
  %s12 = scalar_select 0, %s11, %s9
  $region1: #{tpu_custom_call.1} parent=0
    #allocation3 [shape = 'u8[32768]{0}', space=vmem, size = 0x8000, scoped, tag = 'input window, operand 0, single buffered']
    #allocation4 [shape = 's32[1]{0}', space=sflag, size = 0x4, scoped, tag = 'scoped memory for tpu_custom_call.1']
    #allocation5 [shape = 's32[1]{0}', space=sflag, size = 0x4, scoped, tag = 'scoped memory for tpu_custom_call.1']
    #allocation6 [shape = 'u8[524288]{0}', space=vmem, size = 0x80000, scoped, tag = 'input window, operand 1, single buffered']
    #allocation7 [shape = 's32[1]{0}', space=sflag, size = 0x4, scoped, tag = 'scoped memory for tpu_custom_call.1']
    #allocation8 [shape = 'u8[512]{0}', space=vmem, size = 0x400, scoped, tag = 'input window, operand 2, single buffered']
    #allocation9 [shape = 'u8[4096]{0}', space=vmem, size = 0x1000, scoped, tag = 'output window, operand 0, single buffered']
    #allocation10 [shape = 'u8[4096]{0}', space=vmem, size = 0x1000, scoped, tag = 'output window, operand 1, single buffered']
    #allocation11 [shape = 's32[1]{0}', space=sflag, size = 0x4, scoped, tag = 'scoped memory for tpu_custom_call.1']
    %13 = vsyncpa [#allocation4], 0
    %14 = vsyncpa [#allocation7], 0
    %15 = vsyncpa [#allocation5], 0
    %16 = vsyncpa [#allocation11], 0
    // Predicated region
    $region2: #{tpu_custom_call.1} parent=1 // pred_check
      _
    $region3: #{tpu_custom_call.1} parent=1 // pred_check_branch
      %18 = sbr.rel (0) target = $region5
    $region4: #{tpu_custom_call.1} parent=1 // pred_region
      %s20 = ssub.s32 1024, 1024
      %21 = vsyncadd [#allocation4], %s20
      %s23 = sshll.u32 [#allocation3], 4
      %s24 = int_to_ptr.vmem [resolvable:$true] %s23
      %26 = dma.hbm_to_vmem [thread:$0]  %s0, 1024, %s24, [#allocation4]
    $region5: #{tpu_custom_call.1} parent=1 // pred_fallthru
      _
    // Predicated region
    $region6: #{tpu_custom_call.1} parent=1 // pred_check
      _
    $region7: #{tpu_custom_call.1} parent=1 // pred_check_branch
      %28 = sbr.rel (0) target = $region9
    $region8: #{tpu_custom_call.1} parent=1 // pred_region
      %s30 = ssub.s32 16384, 16384
      %31 = vsyncadd [#allocation7], %s30
      %s32 = sshll.u32 [#allocation6], 4
      %s33 = int_to_ptr.vmem [resolvable:$true] %s32
      %38 = dma.hbm_to_vmem [thread:$0]  %s1, 16384, %s33, [#allocation7], 128, 128, 8
    $region9: #{tpu_custom_call.1} parent=1 // pred_fallthru
      _
    // Predicated region
    $region10: #{tpu_custom_call.1} parent=1 // pred_check
      _
    $region11: #{tpu_custom_call.1} parent=1 // pred_check_branch
      %40 = sbr.rel (0) target = $region13
    $region12: #{tpu_custom_call.1} parent=1 // pred_region
      %s42 = ssub.s32 16, 16
      %43 = vsyncadd [#allocation7], %s42
      %s45 = sshll.u32 [#allocation8], 4
      %s46 = int_to_ptr.vmem [resolvable:$true] %s45
      %48 = dma.hbm_to_vmem [thread:$0]  %s2, 16, %s46, [#allocation7]
    $region13: #{tpu_custom_call.1} parent=1 // pred_fallthru
      _
    // Predicated region
    $region14: #{tpu_custom_call.1} parent=1 // pred_check
      _
    $region15: #{tpu_custom_call.1} parent=1 // pred_check_branch
      %50 = sbr.rel (0) target = $region17
    $region16: #{tpu_custom_call.1} parent=1 // pred_region
      _
    $region17: #{tpu_custom_call.1} parent=1 // pred_fallthru
      _
    // Predicated region
    $region18: #{tpu_custom_call.1} parent=1 // pred_check
      _
    $region19: #{tpu_custom_call.1} parent=1 // pred_check_branch
      %52 = sbr.rel (0) target = $region21
    $region20: #{tpu_custom_call.1} parent=1 // pred_region
      _
    $region21: #{tpu_custom_call.1} parent=1 // pred_fallthru
      _
    // Predicated region
    $region22: #{tpu_custom_call.1} parent=1 // pred_check
      _
    $region23: #{tpu_custom_call.1} parent=1 // pred_check_branch
      %54 = sbr.rel (0) target = $region25
    $region24: #{tpu_custom_call.1} parent=1 // pred_region
      _
    $region25: #{tpu_custom_call.1} parent=1 // pred_fallthru
      _
    // Predicated region
    $region26: #{tpu_custom_call.1} parent=1 // pred_check
      _
    $region27: #{tpu_custom_call.1} parent=1 // pred_check_branch
      %56 = sbr.rel (0) target = $region29
    $region28: #{tpu_custom_call.1} parent=1 // pred_region
      %57 = dma.done [#allocation4], 1024
    $region29: #{tpu_custom_call.1} parent=1 // pred_fallthru
      _
    // Predicated region
    $region30: #{tpu_custom_call.1} parent=1 // pred_check
      _
    $region31: #{tpu_custom_call.1} parent=1 // pred_check_branch
      %59 = sbr.rel (0) target = $region33
    $region32: #{tpu_custom_call.1} parent=1 // pred_region
      %60 = dma.done [#allocation7], 16384
    $region33: #{tpu_custom_call.1} parent=1 // pred_fallthru
      _
    // Predicated region
    $region34: #{tpu_custom_call.1} parent=1 // pred_check
      _
    $region35: #{tpu_custom_call.1} parent=1 // pred_check_branch
      %62 = sbr.rel (0) target = $region37
    $region36: #{tpu_custom_call.1} parent=1 // pred_region
      %63 = dma.done [#allocation7], 16
    $region37: #{tpu_custom_call.1} parent=1 // pred_fallthru
      _
    %p65 = scmp.eq.s32.totalorder 0, 0
    // Predicated region
    $region38: #{tpu_custom_call.1} parent=1 // pred_check
      %p66 = pneg %p65
    $region39: #{tpu_custom_call.1} parent=1 // pred_check_branch
      %68 = sbr.rel (%p66) target = $region41
    $region40: #{tpu_custom_call.1} parent=1 // pred_region
      %v69 = vld [vmem:[#allocation8] sm:$0x1]
      %v71 = vlaneseq
      %v72 = vshrl.u32 %v71, 7
      %v73 = vsub.s32 0, %v72
      %v74 = vrot.slane %v69, %v73
      %76 = vst [vmem:[#allocation2] sm:$0xff] %v74
    $region41: #{tpu_custom_call.1} parent=1 // pred_fallthru
      _
    %v77 = vld [vmem:[#allocation2] sm:$0xff]
    %v78 = vld [vmem:[#allocation3] sm:$0xff]
    %v79 = vld [vmem:[#allocation3 + $0x8] sm:$0xff]
    %v80 = vld [vmem:[#allocation3 + $0x10] sm:$0xff]
    %v81 = vld [vmem:[#allocation3 + $0x18] sm:$0xff]
    %v82 = vld [vmem:[#allocation3 + $0x20] sm:$0xff]
    %v83 = vld [vmem:[#allocation3 + $0x28] sm:$0xff]
    %v84 = vld [vmem:[#allocation3 + $0x30] sm:$0xff]
    %v85 = vld [vmem:[#allocation3 + $0x38] sm:$0xff]
    %v86 = vpack.c.bf16 %v78, %v78
    %v87 = vpack.c.bf16 %v79, %v79
    %v88 = vpack.c.bf16 %v80, %v80
    %v89 = vpack.c.bf16 %v81, %v81
    %v90 = vpack.c.bf16 %v82, %v82
    %v91 = vpack.c.bf16 %v83, %v83
    %v92 = vpack.c.bf16 %v84, %v84
    %v93 = vpack.c.bf16 %v85, %v85
    %v94 = vld [vmem:[#allocation6] sm:$0xff]
    %v95 = vld [vmem:[#allocation6 + $0x8] sm:$0xff]
    %v96 = vld [vmem:[#allocation6 + $0x10] sm:$0xff]
    %v97 = vld [vmem:[#allocation6 + $0x18] sm:$0xff]
    %v98 = vld [vmem:[#allocation6 + $0x20] sm:$0xff]
    %v99 = vld [vmem:[#allocation6 + $0x28] sm:$0xff]
    %v100 = vld [vmem:[#allocation6 + $0x30] sm:$0xff]
    %v101 = vld [vmem:[#allocation6 + $0x38] sm:$0xff]
    %v102 = vld [vmem:[#allocation6 + $0x40] sm:$0xff]
    %v103 = vld [vmem:[#allocation6 + $0x48] sm:$0xff]
    %v104 = vld [vmem:[#allocation6 + $0x50] sm:$0xff]
    %v105 = vld [vmem:[#allocation6 + $0x58] sm:$0xff]
    %v106 = vld [vmem:[#allocation6 + $0x60] sm:$0xff]
    %v107 = vld [vmem:[#allocation6 + $0x68] sm:$0xff]
    %v108 = vld [vmem:[#allocation6 + $0x70] sm:$0xff]
    %v109 = vld [vmem:[#allocation6 + $0x78] sm:$0xff]
    %v110 = vld [vmem:[#allocation6 + $0x80] sm:$0xff]
    %v111 = vld [vmem:[#allocation6 + $0x88] sm:$0xff]
    %v112 = vld [vmem:[#allocation6 + $0x90] sm:$0xff]
    %v113 = vld [vmem:[#allocation6 + $0x98] sm:$0xff]
    %v114 = vld [vmem:[#allocation6 + $0xa0] sm:$0xff]
    %v115 = vld [vmem:[#allocation6 + $0xa8] sm:$0xff]
    %v116 = vld [vmem:[#allocation6 + $0xb0] sm:$0xff]
    %v117 = vld [vmem:[#allocation6 + $0xb8] sm:$0xff]
    %v118 = vld [vmem:[#allocation6 + $0xc0] sm:$0xff]
    %v119 = vld [vmem:[#allocation6 + $0xc8] sm:$0xff]
    %v120 = vld [vmem:[#allocation6 + $0xd0] sm:$0xff]
    %v121 = vld [vmem:[#allocation6 + $0xd8] sm:$0xff]
    %v122 = vld [vmem:[#allocation6 + $0xe0] sm:$0xff]
    %v123 = vld [vmem:[#allocation6 + $0xe8] sm:$0xff]
    %v124 = vld [vmem:[#allocation6 + $0xf0] sm:$0xff]
    %v125 = vld [vmem:[#allocation6 + $0xf8] sm:$0xff]
    %v126 = vld [vmem:[#allocation6 + $0x100] sm:$0xff]
    %v127 = vld [vmem:[#allocation6 + $0x108] sm:$0xff]
    %v128 = vld [vmem:[#allocation6 + $0x110] sm:$0xff]
    %v129 = vld [vmem:[#allocation6 + $0x118] sm:$0xff]
    %v130 = vld [vmem:[#allocation6 + $0x120] sm:$0xff]
    %v131 = vld [vmem:[#allocation6 + $0x128] sm:$0xff]
    %v132 = vld [vmem:[#allocation6 + $0x130] sm:$0xff]
    %v133 = vld [vmem:[#allocation6 + $0x138] sm:$0xff]
    %v134 = vld [vmem:[#allocation6 + $0x140] sm:$0xff]
    %v135 = vld [vmem:[#allocation6 + $0x148] sm:$0xff]
    %v136 = vld [vmem:[#allocation6 + $0x150] sm:$0xff]
    %v137 = vld [vmem:[#allocation6 + $0x158] sm:$0xff]
    %v138 = vld [vmem:[#allocation6 + $0x160] sm:$0xff]
    %v139 = vld [vmem:[#allocation6 + $0x168] sm:$0xff]
    %v140 = vld [vmem:[#allocation6 + $0x170] sm:$0xff]
    %v141 = vld [vmem:[#allocation6 + $0x178] sm:$0xff]
    %v142 = vld [vmem:[#allocation6 + $0x180] sm:$0xff]
    %v143 = vld [vmem:[#allocation6 + $0x188] sm:$0xff]
    %v144 = vld [vmem:[#allocation6 + $0x190] sm:$0xff]
    %v145 = vld [vmem:[#allocation6 + $0x198] sm:$0xff]
    %v146 = vld [vmem:[#allocation6 + $0x1a0] sm:$0xff]
    %v147 = vld [vmem:[#allocation6 + $0x1a8] sm:$0xff]
    %v148 = vld [vmem:[#allocation6 + $0x1b0] sm:$0xff]
    %v149 = vld [vmem:[#allocation6 + $0x1b8] sm:$0xff]
    %v150 = vld [vmem:[#allocation6 + $0x1c0] sm:$0xff]
    %v151 = vld [vmem:[#allocation6 + $0x1c8] sm:$0xff]
    %v152 = vld [vmem:[#allocation6 + $0x1d0] sm:$0xff]
    %v153 = vld [vmem:[#allocation6 + $0x1d8] sm:$0xff]
    %v154 = vld [vmem:[#allocation6 + $0x1e0] sm:$0xff]
    %v155 = vld [vmem:[#allocation6 + $0x1e8] sm:$0xff]
    %v156 = vld [vmem:[#allocation6 + $0x1f0] sm:$0xff]
    %v157 = vld [vmem:[#allocation6 + $0x1f8] sm:$0xff]
    %v158 = vld [vmem:[#allocation6 + $0x200] sm:$0xff]
    %v159 = vld [vmem:[#allocation6 + $0x208] sm:$0xff]
    %v160 = vld [vmem:[#allocation6 + $0x210] sm:$0xff]
    %v161 = vld [vmem:[#allocation6 + $0x218] sm:$0xff]
    %v162 = vld [vmem:[#allocation6 + $0x220] sm:$0xff]
    %v163 = vld [vmem:[#allocation6 + $0x228] sm:$0xff]
    %v164 = vld [vmem:[#allocation6 + $0x230] sm:$0xff]
    %v165 = vld [vmem:[#allocation6 + $0x238] sm:$0xff]
    %v166 = vld [vmem:[#allocation6 + $0x240] sm:$0xff]
    %v167 = vld [vmem:[#allocation6 + $0x248] sm:$0xff]
    %v168 = vld [vmem:[#allocation6 + $0x250] sm:$0xff]
    %v169 = vld [vmem:[#allocation6 + $0x258] sm:$0xff]
    %v170 = vld [vmem:[#allocation6 + $0x260] sm:$0xff]
    %v171 = vld [vmem:[#allocation6 + $0x268] sm:$0xff]
    %v172 = vld [vmem:[#allocation6 + $0x270] sm:$0xff]
    %v173 = vld [vmem:[#allocation6 + $0x278] sm:$0xff]
    %v174 = vld [vmem:[#allocation6 + $0x280] sm:$0xff]
    %v175 = vld [vmem:[#allocation6 + $0x288] sm:$0xff]
    %v176 = vld [vmem:[#allocation6 + $0x290] sm:$0xff]
    %v177 = vld [vmem:[#allocation6 + $0x298] sm:$0xff]
    %v178 = vld [vmem:[#allocation6 + $0x2a0] sm:$0xff]
    %v179 = vld [vmem:[#allocation6 + $0x2a8] sm:$0xff]
    %v180 = vld [vmem:[#allocation6 + $0x2b0] sm:$0xff]
    %v181 = vld [vmem:[#allocation6 + $0x2b8] sm:$0xff]
    %v182 = vld [vmem:[#allocation6 + $0x2c0] sm:$0xff]
    %v183 = vld [vmem:[#allocation6 + $0x2c8] sm:$0xff]
    %v184 = vld [vmem:[#allocation6 + $0x2d0] sm:$0xff]
    %v185 = vld [vmem:[#allocation6 + $0x2d8] sm:$0xff]
    %v186 = vld [vmem:[#allocation6 + $0x2e0] sm:$0xff]
    %v187 = vld [vmem:[#allocation6 + $0x2e8] sm:$0xff]
    %v188 = vld [vmem:[#allocation6 + $0x2f0] sm:$0xff]
    %v189 = vld [vmem:[#allocation6 + $0x2f8] sm:$0xff]
    %v190 = vld [vmem:[#allocation6 + $0x300] sm:$0xff]
    %v191 = vld [vmem:[#allocation6 + $0x308] sm:$0xff]
    %v192 = vld [vmem:[#allocation6 + $0x310] sm:$0xff]
    %v193 = vld [vmem:[#allocation6 + $0x318] sm:$0xff]
    %v194 = vld [vmem:[#allocation6 + $0x320] sm:$0xff]
    %v195 = vld [vmem:[#allocation6 + $0x328] sm:$0xff]
    %v196 = vld [vmem:[#allocation6 + $0x330] sm:$0xff]
    %v197 = vld [vmem:[#allocation6 + $0x338] sm:$0xff]
    %v198 = vld [vmem:[#allocation6 + $0x340] sm:$0xff]
    %v199 = vld [vmem:[#allocation6 + $0x348] sm:$0xff]
    %v200 = vld [vmem:[#allocation6 + $0x350] sm:$0xff]
    %v201 = vld [vmem:[#allocation6 + $0x358] sm:$0xff]
    %v202 = vld [vmem:[#allocation6 + $0x360] sm:$0xff]
    %v203 = vld [vmem:[#allocation6 + $0x368] sm:$0xff]
    %v204 = vld [vmem:[#allocation6 + $0x370] sm:$0xff]
    %v205 = vld [vmem:[#allocation6 + $0x378] sm:$0xff]
    %v206 = vld [vmem:[#allocation6 + $0x380] sm:$0xff]
    %v207 = vld [vmem:[#allocation6 + $0x388] sm:$0xff]
    %v208 = vld [vmem:[#allocation6 + $0x390] sm:$0xff]
    %v209 = vld [vmem:[#allocation6 + $0x398] sm:$0xff]
    %v210 = vld [vmem:[#allocation6 + $0x3a0] sm:$0xff]
    %v211 = vld [vmem:[#allocation6 + $0x3a8] sm:$0xff]
    %v212 = vld [vmem:[#allocation6 + $0x3b0] sm:$0xff]
    %v213 = vld [vmem:[#allocation6 + $0x3b8] sm:$0xff]
    %v214 = vld [vmem:[#allocation6 + $0x3c0] sm:$0xff]
    %v215 = vld [vmem:[#allocation6 + $0x3c8] sm:$0xff]
    %v216 = vld [vmem:[#allocation6 + $0x3d0] sm:$0xff]
    %v217 = vld [vmem:[#allocation6 + $0x3d8] sm:$0xff]
    %v218 = vld [vmem:[#allocation6 + $0x3e0] sm:$0xff]
    %v219 = vld [vmem:[#allocation6 + $0x3e8] sm:$0xff]
    %v220 = vld [vmem:[#allocation6 + $0x3f0] sm:$0xff]
    %v221 = vld [vmem:[#allocation6 + $0x3f8] sm:$0xff]
    %v222 = vpack.c.bf16 %v95, %v94
    %v223 = vpack.c.bf16 %v97, %v96
    %v224 = vpack.c.bf16 %v99, %v98
    %v225 = vpack.c.bf16 %v101, %v100
    %v226 = vpack.c.bf16 %v103, %v102
    %v227 = vpack.c.bf16 %v105, %v104
    %v228 = vpack.c.bf16 %v107, %v106
    %v229 = vpack.c.bf16 %v109, %v108
    %v230 = vpack.c.bf16 %v111, %v110
    %v231 = vpack.c.bf16 %v113, %v112
    %v232 = vpack.c.bf16 %v115, %v114
    %v233 = vpack.c.bf16 %v117, %v116
    %v234 = vpack.c.bf16 %v119, %v118
    %v235 = vpack.c.bf16 %v121, %v120
    %v236 = vpack.c.bf16 %v123, %v122
    %v237 = vpack.c.bf16 %v125, %v124
    %v238 = vpack.c.bf16 %v127, %v126
    %v239 = vpack.c.bf16 %v129, %v128
    %v240 = vpack.c.bf16 %v131, %v130
    %v241 = vpack.c.bf16 %v133, %v132
    %v242 = vpack.c.bf16 %v135, %v134
    %v243 = vpack.c.bf16 %v137, %v136
    %v244 = vpack.c.bf16 %v139, %v138
    %v245 = vpack.c.bf16 %v141, %v140
    %v246 = vpack.c.bf16 %v143, %v142
    %v247 = vpack.c.bf16 %v145, %v144
    %v248 = vpack.c.bf16 %v147, %v146
    %v249 = vpack.c.bf16 %v149, %v148
    %v250 = vpack.c.bf16 %v151, %v150
    %v251 = vpack.c.bf16 %v153, %v152
    %v252 = vpack.c.bf16 %v155, %v154
    %v253 = vpack.c.bf16 %v157, %v156
    %v254 = vpack.c.bf16 %v159, %v158
    %v255 = vpack.c.bf16 %v161, %v160
    %v256 = vpack.c.bf16 %v163, %v162
    %v257 = vpack.c.bf16 %v165, %v164
    %v258 = vpack.c.bf16 %v167, %v166
    %v259 = vpack.c.bf16 %v169, %v168
    %v260 = vpack.c.bf16 %v171, %v170
    %v261 = vpack.c.bf16 %v173, %v172
    %v262 = vpack.c.bf16 %v175, %v174
    %v263 = vpack.c.bf16 %v177, %v176
    %v264 = vpack.c.bf16 %v179, %v178
    %v265 = vpack.c.bf16 %v181, %v180
    %v266 = vpack.c.bf16 %v183, %v182
    %v267 = vpack.c.bf16 %v185, %v184
    %v268 = vpack.c.bf16 %v187, %v186
    %v269 = vpack.c.bf16 %v189, %v188
    %v270 = vpack.c.bf16 %v191, %v190
    %v271 = vpack.c.bf16 %v193, %v192
    %v272 = vpack.c.bf16 %v195, %v194
    %v273 = vpack.c.bf16 %v197, %v196
    %v274 = vpack.c.bf16 %v199, %v198
    %v275 = vpack.c.bf16 %v201, %v200
    %v276 = vpack.c.bf16 %v203, %v202
    %v277 = vpack.c.bf16 %v205, %v204
    %v278 = vpack.c.bf16 %v207, %v206
    %v279 = vpack.c.bf16 %v209, %v208
    %v280 = vpack.c.bf16 %v211, %v210
    %v281 = vpack.c.bf16 %v213, %v212
    %v282 = vpack.c.bf16 %v215, %v214
    %v283 = vpack.c.bf16 %v217, %v216
    %v284 = vpack.c.bf16 %v219, %v218
    %v285 = vpack.c.bf16 %v221, %v220
    %286 = vmatprep.subr.bf16.mxu0 0
    %287 = vmatpush1.bf16.msra.mxu0 %v229
    %288 = vmatprep.subr.bf16.mxu0 0
    %289 = vmatpush1.bf16.msra.mxu0 %v228
    %290 = vmatprep.subr.bf16.mxu0 0
    %291 = vmatpush1.bf16.msra.mxu0 %v227
    %292 = vmatprep.subr.bf16.mxu0 0
    %293 = vmatpush1.bf16.msra.mxu0 %v226
    %294 = vmatprep.subr.bf16.mxu0 0
    %295 = vmatpush1.bf16.msra.mxu0 %v225
    %296 = vmatprep.subr.bf16.mxu0 0
    %297 = vmatpush1.bf16.msra.mxu0 %v224
    %298 = vmatprep.subr.bf16.mxu0 0
    %299 = vmatpush1.bf16.msra.mxu0 %v223
    %300 = vmatprep.subr.bf16.mxu0 0
    %301 = vmatpush1.bf16.msra.mxu0 %v222
    %302 = vmatprep.subr.bf16.mxu0 0
    %303 = vmatpush2.bf16.msra.mxu0 %v237
    %304 = vmatprep.subr.bf16.mxu0 0
    %305 = vmatpush2.bf16.msra.mxu0 %v236
    %306 = vmatprep.subr.bf16.mxu0 0
    %307 = vmatpush2.bf16.msra.mxu0 %v235
    %308 = vmatprep.subr.bf16.mxu0 0
    %309 = vmatpush2.bf16.msra.mxu0 %v234
    %310 = vmatprep.subr.bf16.mxu0 0
    %311 = vmatpush2.bf16.msra.mxu0 %v233
    %312 = vmatprep.subr.bf16.mxu0 0
    %313 = vmatpush2.bf16.msra.mxu0 %v232
    %314 = vmatprep.subr.bf16.mxu0 0
    %315 = vmatpush2.bf16.msra.mxu0 %v231
    %316 = vmatprep.subr.bf16.mxu0 0
    %317 = vmatpush2.bf16.msra.mxu0 %v230
    %318 = vmatprep.mubr.bf16.mxu0 %v87
    %319 = vmatmul.mubr.bf16.gmra.mxu0 %v86
    %v320 = vpop.f32.mrf.mxu0
    %v321 = vadd.f32 0.0, %v320
    %v322 = vpop.f32.mrf.mxu0
    %v323 = vpop.f32.mrf.mxu0
    %v324 = vpop.f32.mrf.mxu0
    %325 = vdwg.mxu0
    %326 = vmatprep.subr.bf16.mxu0 0
    %327 = vmatpush1.bf16.msra.mxu0 %v245
    %328 = vmatprep.subr.bf16.mxu0 0
    %329 = vmatpush1.bf16.msra.mxu0 %v244
    %330 = vmatprep.subr.bf16.mxu0 0
    %331 = vmatpush1.bf16.msra.mxu0 %v243
    %332 = vmatprep.subr.bf16.mxu0 0
    %333 = vmatpush1.bf16.msra.mxu0 %v242
    %334 = vmatprep.subr.bf16.mxu0 0
    %335 = vmatpush1.bf16.msra.mxu0 %v241
    %336 = vmatprep.subr.bf16.mxu0 0
    %337 = vmatpush1.bf16.msra.mxu0 %v240
    %338 = vmatprep.subr.bf16.mxu0 0
    %339 = vmatpush1.bf16.msra.mxu0 %v239
    %340 = vmatprep.subr.bf16.mxu0 0
    %341 = vmatpush1.bf16.msra.mxu0 %v238
    %342 = vmatprep.subr.bf16.mxu0 0
    %343 = vmatpush2.bf16.msra.mxu0 %v253
    %344 = vmatprep.subr.bf16.mxu0 0
    %345 = vmatpush2.bf16.msra.mxu0 %v252
    %346 = vmatprep.subr.bf16.mxu0 0
    %347 = vmatpush2.bf16.msra.mxu0 %v251
    %348 = vmatprep.subr.bf16.mxu0 0
    %349 = vmatpush2.bf16.msra.mxu0 %v250
    %350 = vmatprep.subr.bf16.mxu0 0
    %351 = vmatpush2.bf16.msra.mxu0 %v249
    %352 = vmatprep.subr.bf16.mxu0 0
    %353 = vmatpush2.bf16.msra.mxu0 %v248
    %354 = vmatprep.subr.bf16.mxu0 0
    %355 = vmatpush2.bf16.msra.mxu0 %v247
    %356 = vmatprep.subr.bf16.mxu0 0
    %357 = vmatpush2.bf16.msra.mxu0 %v246
    %358 = vmatprep.mubr.bf16.mxu0 %v89
    %359 = vmatmul.mubr.bf16.gmra.mxu0 %v88
    %v360 = vpop.f32.mrf.mxu0
    %v361 = vadd.f32 %v321, %v360
    %v362 = vpop.f32.mrf.mxu0
    %v363 = vpop.f32.mrf.mxu0
    %v364 = vpop.f32.mrf.mxu0
    %365 = vdwg.mxu0
    %366 = vmatprep.subr.bf16.mxu0 0
    %367 = vmatpush1.bf16.msra.mxu0 %v261
    %368 = vmatprep.subr.bf16.mxu0 0
    %369 = vmatpush1.bf16.msra.mxu0 %v260
    %370 = vmatprep.subr.bf16.mxu0 0
    %371 = vmatpush1.bf16.msra.mxu0 %v259
    %372 = vmatprep.subr.bf16.mxu0 0
    %373 = vmatpush1.bf16.msra.mxu0 %v258
    %374 = vmatprep.subr.bf16.mxu0 0
    %375 = vmatpush1.bf16.msra.mxu0 %v257
    %376 = vmatprep.subr.bf16.mxu0 0
    %377 = vmatpush1.bf16.msra.mxu0 %v256
    %378 = vmatprep.subr.bf16.mxu0 0
    %379 = vmatpush1.bf16.msra.mxu0 %v255
    %380 = vmatprep.subr.bf16.mxu0 0
    %381 = vmatpush1.bf16.msra.mxu0 %v254
    %382 = vmatprep.subr.bf16.mxu0 0
    %383 = vmatpush2.bf16.msra.mxu0 %v269
    %384 = vmatprep.subr.bf16.mxu0 0
    %385 = vmatpush2.bf16.msra.mxu0 %v268
    %386 = vmatprep.subr.bf16.mxu0 0
    %387 = vmatpush2.bf16.msra.mxu0 %v267
    %388 = vmatprep.subr.bf16.mxu0 0
    %389 = vmatpush2.bf16.msra.mxu0 %v266
    %390 = vmatprep.subr.bf16.mxu0 0
    %391 = vmatpush2.bf16.msra.mxu0 %v265
    %392 = vmatprep.subr.bf16.mxu0 0
    %393 = vmatpush2.bf16.msra.mxu0 %v264
    %394 = vmatprep.subr.bf16.mxu0 0
    %395 = vmatpush2.bf16.msra.mxu0 %v263
    %396 = vmatprep.subr.bf16.mxu0 0
    %397 = vmatpush2.bf16.msra.mxu0 %v262
    %398 = vmatprep.mubr.bf16.mxu0 %v91
    %399 = vmatmul.mubr.bf16.gmra.mxu0 %v90
    %v400 = vpop.f32.mrf.mxu0
    %v401 = vadd.f32 %v361, %v400
    %v402 = vpop.f32.mrf.mxu0
    %v403 = vpop.f32.mrf.mxu0
    %v404 = vpop.f32.mrf.mxu0
    %405 = vdwg.mxu0
    %406 = vmatprep.subr.bf16.mxu0 0
    %407 = vmatpush1.bf16.msra.mxu0 %v277
    %408 = vmatprep.subr.bf16.mxu0 0
    %409 = vmatpush1.bf16.msra.mxu0 %v276
    %410 = vmatprep.subr.bf16.mxu0 0
    %411 = vmatpush1.bf16.msra.mxu0 %v275
    %412 = vmatprep.subr.bf16.mxu0 0
    %413 = vmatpush1.bf16.msra.mxu0 %v274
    %414 = vmatprep.subr.bf16.mxu0 0
    %415 = vmatpush1.bf16.msra.mxu0 %v273
    %416 = vmatprep.subr.bf16.mxu0 0
    %417 = vmatpush1.bf16.msra.mxu0 %v272
    %418 = vmatprep.subr.bf16.mxu0 0
    %419 = vmatpush1.bf16.msra.mxu0 %v271
    %420 = vmatprep.subr.bf16.mxu0 0
    %421 = vmatpush1.bf16.msra.mxu0 %v270
    %422 = vmatprep.subr.bf16.mxu0 0
    %423 = vmatpush2.bf16.msra.mxu0 %v285
    %424 = vmatprep.subr.bf16.mxu0 0
    %425 = vmatpush2.bf16.msra.mxu0 %v284
    %426 = vmatprep.subr.bf16.mxu0 0
    %427 = vmatpush2.bf16.msra.mxu0 %v283
    %428 = vmatprep.subr.bf16.mxu0 0
    %429 = vmatpush2.bf16.msra.mxu0 %v282
    %430 = vmatprep.subr.bf16.mxu0 0
    %431 = vmatpush2.bf16.msra.mxu0 %v281
    %432 = vmatprep.subr.bf16.mxu0 0
    %433 = vmatpush2.bf16.msra.mxu0 %v280
    %434 = vmatprep.subr.bf16.mxu0 0
    %435 = vmatpush2.bf16.msra.mxu0 %v279
    %436 = vmatprep.subr.bf16.mxu0 0
    %437 = vmatpush2.bf16.msra.mxu0 %v278
    %438 = vmatprep.mubr.bf16.mxu0 %v93
    %439 = vmatmul.mubr.bf16.gmra.mxu0 %v92
    %v440 = vpop.f32.mrf.mxu0
    %v441 = vadd.f32 %v401, %v440
    %v442 = vpop.f32.mrf.mxu0
    %v443 = vpop.f32.mrf.mxu0
    %v444 = vpop.f32.mrf.mxu0
    %445 = vdwg.mxu0
    %v446 = vadd.f32 %v77, %v441
    %447 = vst [vmem:[#allocation2] sm:$0xff] %v446
    // Predicated region
    $region42: #{tpu_custom_call.1} parent=1 // pred_check
      %p448 = pneg %p65
    $region43: #{tpu_custom_call.1} parent=1 // pred_check_branch
      %450 = sbr.rel (%p448) target = $region45
    $region44: #{tpu_custom_call.1} parent=1 // pred_region
      %v451 = vlaneseq
      %v452 = vand.u32 %v451, 127
      %v453 = vlaneseq
      %v454 = vshrl.u32 %v453, 7
      %s455 = smul.u32 0, 8
      %v456 = vstv %s455
      %v457 = vadd.s32 %v454, %v456
      %vm458 = vcmp.lt.s32.totalorder %v457, 2
      %v459 = vld [vmem:[#allocation2] sm:$0xff]
      %v460 = vmul.f32 %v459, 0.33333334
      %v461 = vld [vmem:[%s3] sm:$0xff]
      %v462 = vld [vmem:[%s4] sm:$0xff]
      %v463 = vmul.f32 %v462, 0.33333334
      %vm464 = vcmp.lt.s32.totalorder %v452, 16
      %v465 = vsel %vm458, 1, 0
      %vm466 = vcmp.eq.s32.totalorder %v465, 1
      %vm467 = vmand %vm464, %vm466
      %v468 = vsel %vm464, %v460, -1e+30
      %v469 = vsel %vm464, %v461, -1e+30
      %v470 = vsel %vm464, %v463, -1e+30
      %471 = vmax.xlane.f32.xlu0 %v468
      %v472 = vpop.xlane.xlu0 %471
      %v473 = vsub.f32 %v468, %v472
      %v474 = vmul.f32 %v473, 1.442695
      %v475 = vpow.pop %v474
      %476 = vadd.xlane.f32.xlu0 %v475
      %v477 = vpop.xlane.xlu0 %476
      %v478 = vlog2.pop %v477
      %v479 = vmul.f32 %v478, 0.6931472
      %v480 = vsub.f32 %v473, %v479
      %481 = vmax.xlane.f32.xlu0 %v469
      %v482 = vpop.xlane.xlu0 %481
      %v483 = vsub.f32 %v469, %v482
      %v484 = vmul.f32 %v483, 1.442695
      %v485 = vpow.pop %v484
      %486 = vadd.xlane.f32.xlu0 %v485
      %v487 = vpop.xlane.xlu0 %486
      %v488 = vlog2.pop %v487
      %v489 = vmul.f32 %v488, 0.6931472
      %v490 = vsub.f32 %v483, %v489
      %491 = vmax.xlane.f32.xlu0 %v470
      %v492 = vpop.xlane.xlu0 %491
      %v493 = vsub.f32 %v470, %v492
      %v494 = vmul.f32 %v493, 1.442695
      %v495 = vpow.pop %v494
      %496 = vadd.xlane.f32.xlu0 %v495
      %v497 = vpop.xlane.xlu0 %496
      %v498 = vlog2.pop %v497
      %v499 = vmul.f32 %v498, 0.6931472
      %v500 = vsub.f32 %v493, %v499
      %v501 = vld [vmem:[%s5] sm:$0xff]
      %502 = vset.pattern.permute.xlu0 0
      %503 = vperm.xlu0 %502, %v501
      %v504 = vpop.permute.xlu0 %503
      %vm505 = vcmp.eq.s32.totalorder %v452, %v504
      %vm506 = vmand %vm505, %vm467
      %v507 = vsub.f32 0.0, %v490
      %v508 = vsel %vm506, %v507, 0.0
      %509 = vadd.xlane.f32.xlu0 %v508
      %v510 = vpop.xlane.xlu0 %509
      %v511 = vrot.slane %v510, 4
      %v512 = vadd.f32 %v510, %v511
      %v513 = vrot.slane %v512, 2
      %v514 = vadd.f32 %v512, %v513
      %v515 = vrot.slane %v514, 1
      %v516 = vadd.f32 %v514, %v515
      %s517 = vtos %v516
      %v518 = vmul.f32 %v480, 1.442695
      %v519 = vpow.pop %v518
      %v520 = vsub.f32 %v480, %v500
      %v521 = vmul.f32 %v519, %v520
      %v522 = vsel %vm467, %v521, 0.0
      %523 = vadd.xlane.f32.xlu0 %v522
      %v524 = vpop.xlane.xlu0 %523
      %v525 = vrot.slane %v524, 4
      %v526 = vadd.f32 %v524, %v525
      %v527 = vrot.slane %v526, 2
      %v528 = vadd.f32 %v526, %v527
      %v529 = vrot.slane %v528, 1
      %v530 = vadd.f32 %v528, %v529
      %s531 = vtos %v530
      %v532 = vstv %s517
      %533 = vst [vmem:[#allocation9] sm:$0xff] %v532
      %v534 = vstv %s531
      %535 = vst [vmem:[#allocation10] sm:$0xff] %v534
    $region45: #{tpu_custom_call.1} parent=1 // pred_fallthru
      _
    // Predicated region
    $region46: #{tpu_custom_call.1} parent=1 // pred_check
      _
    $region47: #{tpu_custom_call.1} parent=1 // pred_check_branch
      %537 = sbr.rel (0) target = $region49
    $region48: #{tpu_custom_call.1} parent=1 // pred_region
      %s539 = ssub.s32 128, 128
      %540 = vsyncadd [#allocation5], %s539
      %s542 = sshll.u32 [#allocation9], 4
      %s543 = int_to_ptr.vmem [resolvable:$true] %s542
      %545 = dma.vmem_to_hbm [thread:$0]  %s543, 128, %s6, [#allocation5]
    $region49: #{tpu_custom_call.1} parent=1 // pred_fallthru
      _
    // Predicated region
    $region50: #{tpu_custom_call.1} parent=1 // pred_check
      _
    $region51: #{tpu_custom_call.1} parent=1 // pred_check_branch
      %547 = sbr.rel (0) target = $region53
    $region52: #{tpu_custom_call.1} parent=1 // pred_region
      %s549 = ssub.s32 128, 128
      %550 = vsyncadd [#allocation11], %s549
      %s552 = sshll.u32 [#allocation10], 4
      %s553 = int_to_ptr.vmem [resolvable:$true] %s552
      %555 = dma.vmem_to_hbm [thread:$0]  %s553, 128, %s7, [#allocation11]
    $region53: #{tpu_custom_call.1} parent=1 // pred_fallthru
      _
    // Predicated region
    $region54: #{tpu_custom_call.1} parent=1 // pred_check
      _
    $region55: #{tpu_custom_call.1} parent=1 // pred_check_branch
      %557 = sbr.rel (0) target = $region57
    $region56: #{tpu_custom_call.1} parent=1 // pred_region
      %558 = dma.done [#allocation5], 128
    $region57: #{tpu_custom_call.1} parent=1 // pred_fallthru
      _
    // Predicated region
    $region58: #{tpu_custom_call.1} parent=1 // pred_check
      _
    $region59: #{tpu_custom_call.1} parent=1 // pred_check_branch
      %560 = sbr.rel (0) target = $region61
    $region60: #{tpu_custom_call.1} parent=1 // pred_region
      %561 = dma.done [#allocation11], 128
    $region61: #{tpu_custom_call.1} parent=1 // pred_fallthru
      _
    %562 = vsyncpa [#allocation4], 1
    %563 = vsyncpa [#allocation7], 1
    %564 = vsyncpa [#allocation5], 1
    %565 = vsyncpa [#allocation11], 1

</llo_original>
